<compile_context>
chip_gen: v6e
topology: v6e:2x2x1
jax: 0.10.0
libtpu: 0.0.40
codegen_flags: <defaults>
</compile_context>

<pallas_src>
import functools
import math

import jax
import jax.numpy as jnp
from jax import lax
from jax.experimental import pallas as pl
from jax.experimental.pallas import tpu as pltpu

_LANE = 128
_SUBLANE = 8


def _cdiv(a, b):
    return -(-a // b)


def _round_up(x, m):
    return _cdiv(x, m) * m


def _round_down(x, m):
    return (x // m) * m


def _detect_vmem_capacity_bytes():
    try:
        cap = int(pltpu.get_tpu_info().vmem_capacity_bytes)
        if cap > 0:
            return cap
    except Exception:
        pass
    return 64 * 1024 * 1024  # conservative fallback (v7x-class assumptions)


_VMEM_CAP_BYTES = _detect_vmem_capacity_bytes()
if _VMEM_CAP_BYTES >= 96 * 1024 * 1024:
    # v5e / v6e class: 128 MiB VMEM, single TensorCore per chip.
    _TARGET_BLOCK_BYTES = 6 * 1024 * 1024
    _VMEM_LIMIT_BYTES = 64 * 1024 * 1024
    _MIN_ROW_STEPS = 1          # no benefit from forcing extra grid steps
else:
    # v7x class: 64 MiB VMEM, 2 TensorCores (megacore) per chip.
    _TARGET_BLOCK_BYTES = 4 * 1024 * 1024
    _VMEM_LIMIT_BYTES = 44 * 1024 * 1024
    _MIN_ROW_STEPS = 4          # >=2 pipelined steps per core on the row axis


def _compiler_params(n_grid_axes):
    return pltpu.CompilerParams(
        dimension_semantics=("parallel",) * n_grid_axes,
        vmem_limit_bytes=_VMEM_LIMIT_BYTES,
    )


def _pack_factor(c):
    """Smallest g such that g*c is a multiple of the 128-wide lane axis."""
    return _LANE // math.gcd(c, _LANE)


def _row_tile(n_rows, width, itemsize, f32_live):
    """Row tile: multiple of 8, ~target block bytes, VMEM-budgeted incl. temps."""
    row_io = width * itemsize
    row_f32 = width * 4
    # Per-row VMEM footprint: (in + out) double-buffered pipeline blocks plus
    # ~f32_live block-sized f32 temporaries live inside the kernel body.
    per_row = 4 * row_io + f32_live * row_f32
    budget = (_VMEM_LIMIT_BYTES * 3) // 4
    t = min(_TARGET_BLOCK_BYTES // row_io, budget // per_row)
    t = _round_down(max(t, _SUBLANE), _SUBLANE)
    if _MIN_ROW_STEPS > 1 and n_rows * row_io > _TARGET_BLOCK_BYTES:
        # 2-TC parts only: keep >= _MIN_ROW_STEPS steps on the parallel row axis
        # so each TensorCore gets >= 2 software-pipelined steps.
        t = min(t, max(_SUBLANE, _round_up(_cdiv(n_rows, _MIN_ROW_STEPS), _SUBLANE)))
    if t >= n_rows:
        return n_rows            # full dim -> always a legal block shape
    return t


def _cf_tiles(bsz, c, hw, itemsize):
    """(tb, tile_hw) for channels_first blocks of shape (tb, C, tile_hw)."""
    per_elem = 4 * itemsize + 3 * 4           # pipeline buffers + ~3 f32 temps
    max_block_elems = min(_TARGET_BLOCK_BYTES // itemsize,
                          ((_VMEM_LIMIT_BYTES * 3) // 4) // per_elem)
    if hw <= _LANE:
        tile_hw = hw
    else:
        tile_hw = _round_down(max(max_block_elems // c, _LANE), _LANE)
        tile_hw = min(tile_hw, _round_up(hw, _LANE))
        if tile_hw >= hw:
            tile_hw = hw
    # Batch-block so small-HW / large-C late stages still move big blocks.
    tb = max(1, min(bsz, max_block_elems // max(c * tile_hw, 1)))
    return tb, tile_hw


# ---------------------------------------------------------------------------
# Exact segment sum / broadcast on the MXU (DEFAULT precision, bf16 parts)
# ---------------------------------------------------------------------------

def _bf16_parts3(v):
    # 3-way bf16 decomposition: p0 + p1 + p2 == v to ~2^-24 relative.
    p0 = v.astype(jnp.bfloat16)
    r0 = v - p0.astype(jnp.float32)
    p1 = r0.astype(jnp.bfloat16)
    p2 = (r0 - p1.astype(jnp.float32)).astype(jnp.bfloat16)
    return p0, p1, p2


def _seg_sum(v, gather3):
    # v: (tile, w) f32 with w a multiple of 128; gather3: (3w, g) bf16 0/1.
    # The three bf16 parts are concatenated along K (lane-aligned), so the
    # 256-wide MXU columns are filled and the reduction costs ~3 passes.
    p0, p1, p2 = _bf16_parts3(v)
    vv = jnp.concatenate([p0, p1, p2], axis=-1)              # (tile, 3w)
    return jnp.dot(vv, gather3, preferred_element_type=jnp.float32)


def _seg_bcast(s, scatter):
    # s: (tile, g) f32 per-segment values; scatter: (g, w) bf16 0/1.
    # Three tiny-K DEFAULT-precision dots (one per bf16 part) -> exact broadcast
    # without any unaligned lane concatenation of the narrow operand.
    p0, p1, p2 = _bf16_parts3(s)
    out = jnp.dot(p0, scatter, preferred_element_type=jnp.float32)
    out = out + jnp.dot(p1, scatter, preferred_element_type=jnp.float32)
    out = out + jnp.dot(p2, scatter, preferred_element_type=jnp.float32)
    return out


def _segment_matrices(c, g):
    w = g * c
    seg_of_lane = jnp.arange(w, dtype=jnp.int32) // c
    seg_ids = jnp.arange(g, dtype=jnp.int32)
    gather = (seg_of_lane[:, None] == seg_ids[None, :]).astype(jnp.bfloat16)   # (w, g)
    scatter = (seg_ids[:, None] == seg_of_lane[None, :]).astype(jnp.bfloat16)  # (g, w)
    gather3 = jnp.concatenate([gather, gather, gather], axis=0)                # (3w, g)
    return gather3, scatter


# ---------------------------------------------------------------------------
# Kernels
# ---------------------------------------------------------------------------

def _ln_rows_kernel(x_ref, w_ref, b_ref, o_ref, *, eps):
    # x_ref: (tile, C) with C a multiple of 128; normalize each row over C.
    # Stats are kept in f32 (a dedicated bf16 elementwise path is a possible
    # further v7x optimization).
    x = x_ref[...].astype(jnp.float32)
    u = jnp.mean(x, axis=-1, keepdims=True)
    d = x - u
    v = jnp.mean(d * d, axis=-1, keepdims=True)          # biased variance
    y = d * lax.rsqrt(v + eps)
    o_ref[...] = (y * w_ref[...].astype(jnp.float32)
                  + b_ref[...].astype(jnp.float32)).astype(o_ref.dtype)


def _ln_rows_packed_kernel(x_ref, w_ref, b_ref, g3_ref, sc_ref, o_ref, *, eps, inv_c):
    # x_ref: (tile, g*c).  Each physical row packs g logical rows of length c so
    # the lane axis is a dense multiple of 128 (full vregs, unmasked stores).
    # g3_ref/sc_ref are the resident 0/1 segment-sum / segment-broadcast
    # matrices (bf16), built once in the wrapper -- no per-step mask rebuild.
    x = x_ref[...].astype(jnp.float32)
    g3 = g3_ref[...]
    sc = sc_ref[...]
    u = _seg_sum(x, g3) * inv_c                          # (tile, g) segment means
    d = x - _seg_bcast(u, sc)
    r = lax.rsqrt(_seg_sum(d * d, g3) * inv_c + eps)     # (tile, g)
    o_ref[...] = (d * _seg_bcast(r, sc) * w_ref[...].astype(jnp.float32)
                  + b_ref[...].astype(jnp.float32)).astype(o_ref.dtype)


def _ln_channels_first_kernel(x_ref, w_ref, b_ref, o_ref, *, eps):
    # x_ref: (tb, C, tile_hw) block of an NCHW tensor viewed as (B, C, H*W).
    # Normalize over the channel (sublane) axis; spatial stays lane-dense, so no
    # NCHW<->NHWC transposes are needed around the kernel.
    x = x_ref[...].astype(jnp.float32)
    u = jnp.mean(x, axis=1, keepdims=True)
    d = x - u
    v = jnp.mean(d * d, axis=1, keepdims=True)
    y = d * lax.rsqrt(v + eps)
    o_ref[...] = (y * w_ref[...].astype(jnp.float32)     # (C, 1) broadcasts over (tb, C, hw)
                  + b_ref[...].astype(jnp.float32)).astype(o_ref.dtype)


# ---------------------------------------------------------------------------
# pallas_call wrappers
# ---------------------------------------------------------------------------

def _run_rows(kernel_fn, x2d, resident, f32_live):
    """Layer-norm over the last dim of a (N, W) slab, tiled over rows."""
    n, width = x2d.shape
    tile = _row_tile(n, width, x2d.dtype.itemsize, f32_live)
    grid = (_cdiv(n, tile),)
    in_specs = [pl.BlockSpec((tile, width), lambda i: (i, 0))]
    # Small operands (scale/shift, segment matrices) stay resident in VMEM.
    in_specs += [pl.BlockSpec(r.shape, lambda i: (0, 0)) for r in resident]
    return pl.pallas_call(
        kernel_fn,
        out_shape=jax.ShapeDtypeStruct((n, width), x2d.dtype),
        grid=grid,
        in_specs=in_specs,
        out_specs=pl.BlockSpec((tile, width), lambda i: (i, 0)),
        compiler_params=_compiler_params(1),
    )(x2d, *resident)


def _run_channels_first(x3d, w_col, b_col, eps):
    """Layer-norm over axis 1 of (B, C, HW), tiled over batch and spatial."""
    bsz, c, hw = x3d.shape
    tb, tile_hw = _cf_tiles(bsz, c, hw, x3d.dtype.itemsize)
    grid = (_cdiv(bsz, tb), _cdiv(hw, tile_hw))
    kernel = functools.partial(_ln_channels_first_kernel, eps=eps)
    return pl.pallas_call(
        kernel,
        out_shape=jax.ShapeDtypeStruct((bsz, c, hw), x3d.dtype),
        grid=grid,
        in_specs=[
            pl.BlockSpec((tb, c, tile_hw), lambda i, j: (i, 0, j)),
            pl.BlockSpec((c, 1), lambda i, j: (0, 0)),
            pl.BlockSpec((c, 1), lambda i, j: (0, 0)),
        ],
        out_specs=pl.BlockSpec((tb, c, tile_hw), lambda i, j: (i, 0, j)),
        compiler_params=_compiler_params(2),
    )(x3d, w_col, b_col)


# ---------------------------------------------------------------------------
# Module
# ---------------------------------------------------------------------------

class LayerNormPallas:
    """JAX/Pallas equivalent of the ConvNeXt LayerNorm module."""

    def __init__(self, normalized_shape, eps=1e-6, data_format="channels_last",
                 reshape_last_to_first=False):
        if data_format not in ("channels_last", "channels_first"):
            raise NotImplementedError
        self.eps = eps
        self.data_format = data_format
        self.normalized_shape = (normalized_shape,)
        self.reshape_last_to_first = reshape_last_to_first  # kept for parity; unused in forward
        self.weight = jnp.ones((normalized_shape,), dtype=jnp.float32)
        self.bias = jnp.zeros((normalized_shape,), dtype=jnp.float32)
        c = int(normalized_shape)
        self._g = _pack_factor(c)
        if data_format == "channels_last" and self._g > 1 and self._g * c <= 4096:
            self._gather3, self._scatter = _segment_matrices(c, self._g)
        else:
            self._gather3 = self._scatter = None

    def __call__(self, x):
        c = self.normalized_shape[0]
        if self.data_format == "channels_last":
            assert x.shape[-1] == c
            lead = x.shape[:-1]
            x2d = x.reshape(-1, c)
            n = x2d.shape[0]
            g = self._g
            if self._gather3 is not None and n % g == 0:
                # Lane-dense packed path: (N, C) viewed as (N/g, g*C) with g*C a
                # multiple of 128 -> unmasked, full-vreg loads/stores.
                width = g * c
                xp = x2d.reshape(n // g, width)
                wp = jnp.tile(self.weight, g).reshape(1, width)
                bp = jnp.tile(self.bias, g).reshape(1, width)
                kern = functools.partial(_ln_rows_packed_kernel,
                                         eps=self.eps, inv_c=1.0 / c)
                y2d = _run_rows(kern, xp,
                                (wp, bp, self._gather3, self._scatter),
                                f32_live=6).reshape(n, c)
            else:
                # Fallback: C already a multiple of 128, or n not divisible by g.
                # A bulk(packed)+remainder split for the n % g != 0 case was
                # considered (review item), but the slice/concat it needs costs
                # ~2 extra HBM passes -- more than the masked-lane penalty.
                kern = functools.partial(_ln_rows_kernel, eps=self.eps)
                y2d = _run_rows(kern, x2d,
                                (self.weight.reshape(1, c), self.bias.reshape(1, c)),
                                f32_live=4)
            return y2d.reshape(*lead, c)
        else:
            # channels_first: (B, C, H, W) -> view as (B, C, H*W); no transpose.
            assert x.shape[1] == c
            b, _, h, w = x.shape
            x3d = x.reshape(b, c, h * w)
            y3d = _run_channels_first(
                x3d, self.weight.reshape(c, 1), self.bias.reshape(c, 1), self.eps)
            return y3d.reshape(b, c, h, w)


# ---------------------------------------------------------------------------
# Pure-JAX references + test
# ---------------------------------------------------------------------------

def _ref_channels_first(x, w, b, eps):
    u = jnp.mean(x, axis=1, keepdims=True)
    s = jnp.mean((x - u) ** 2, axis=1, keepdims=True)
    xn = (x - u) / jnp.sqrt(s + eps)
    return w[None, :, None, None] * xn + b[None, :, None, None]


def _ref_channels_last(x, w, b, eps):
    u = jnp.mean(x, axis=-1, keepdims=True)
    s = jnp.mean((x - u) ** 2, axis=-1, keepdims=True)
    return (x - u) / jnp.sqrt(s + eps) * w + b


if __name__ == "__main__":
    key = jax.random.PRNGKey(0)
    k1, k2, k3, k4, k5, kw, kb, kw2, kb2, kw3, kb3 = jax.random.split(key, 11)

    # --- C=4, both data formats (tiny smoke shapes) ---------------------------
    C = 4
    x_cf = jax.random.normal(k1, (2, C, 16, 16), dtype=jnp.float32)   # NCHW
    x_cl = jax.random.normal(k2, (2, 16, 16, C), dtype=jnp.float32)   # NHWC

    ln_cf = LayerNormPallas(C, eps=1e-6, data_format="channels_first")
    ln_cl = LayerNormPallas(C, eps=1e-6, data_format="channels_last")
    ln_cf.weight = 1.0 + 0.1 * jax.random.normal(kw, (C,), dtype=jnp.float32)
    ln_cf.bias = 0.1 * jax.random.normal(kb, (C,), dtype=jnp.float32)
    ln_cl.weight, ln_cl.bias = ln_cf.weight, ln_cf.bias

    y_cf = jax.block_until_ready(ln_cf(x_cf))
    y_cl = jax.block_until_ready(ln_cl(x_cl))
    ref_cf = _ref_channels_first(x_cf, ln_cf.weight, ln_cf.bias, ln_cf.eps)
    ref_cl = _ref_channels_last(x_cl, ln_cl.weight, ln_cl.bias, ln_cl.eps)
    assert y_cf.shape == x_cf.shape and y_cf.dtype == x_cf.dtype
    assert y_cl.shape == x_cl.shape and y_cl.dtype == x_cl.dtype
    assert jnp.allclose(y_cf, ref_cf, atol=1e-5, rtol=1e-5)
    assert jnp.allclose(y_cl, ref_cl, atol=1e-5, rtol=1e-5)

    # --- realistic ConvNeXt-ish C=96 channels_last (packed path, width 384) ---
    C96 = 96
    x_96 = jax.random.normal(k3, (2, 8, 8, C96), dtype=jnp.float32)
    ln_96 = LayerNormPallas(C96, eps=1e-6, data_format="channels_last")
    ln_96.weight = 1.0 + 0.1 * jax.random.normal(kw2, (C96,), dtype=jnp.float32)
    ln_96.bias = 0.1 * jax.random.normal(kb2, (C96,), dtype=jnp.float32)
    y_96 = jax.block_until_ready(ln_96(x_96))
    ref_96 = _ref_channels_last(x_96, ln_96.weight, ln_96.bias, ln_96.eps)
    assert y_96.shape == x_96.shape and y_96.dtype == x_96.dtype
    assert jnp.allclose(y_96, ref_96, atol=1e-5, rtol=1e-5)

    # --- C multiple of 128 (plain lane-dense path) ----------------------------
    C2 = 256
    x_big = jax.random.normal(k4, (5, 8, C2), dtype=jnp.float32)
    ln_big = LayerNormPallas(C2, eps=1e-6, data_format="channels_last")
    ln_big.weight = 1.0 + 0.1 * jax.random.normal(kw3, (C2,), dtype=jnp.float32)
    ln_big.bias = 0.1 * jax.random.normal(kb3, (C2,), dtype=jnp.float32)
    y_big = jax.block_until_ready(ln_big(x_big))
    ref_big = _ref_channels_last(x_big, ln_big.weight, ln_big.bias, ln_big.eps)
    assert y_big.shape == x_big.shape and y_big.dtype == x_big.dtype
    assert jnp.allclose(y_big, ref_big, atol=1e-5, rtol=1e-5)

    # --- late-stage channels_first: larger C, tiny HW (batch-blocked path) ----
    C3 = 96
    x_late = jax.random.normal(k5, (3, C3, 7, 7), dtype=jnp.float32)
    ln_late = LayerNormPallas(C3, eps=1e-6, data_format="channels_first")
    y_late = jax.block_until_ready(ln_late(x_late))
    ref_late = _ref_channels_first(x_late, ln_late.weight, ln_late.bias, ln_late.eps)
    assert y_late.shape == x_late.shape and y_late.dtype == x_late.dtype
    assert jnp.allclose(y_late, ref_late, atol=1e-5, rtol=1e-5)

    print("KERNEL_OK")
</pallas_src>

<mosaic_0001>
module attributes {stable_mosaic.version = 11 : i64} {
  func.func @_ln_channels_first_kernel(%arg0: i32, %arg1: i32, %arg2: memref<2x4x256xf32, #tpu.memory_space<vmem>>, %arg3: memref<4x1xf32, #tpu.memory_space<vmem>>, %arg4: memref<4x1xf32, #tpu.memory_space<vmem>>, %arg5: memref<2x4x256xf32, #tpu.memory_space<vmem>>) attributes {dimension_semantics = [#tpu.dimension_semantics<parallel>, #tpu.dimension_semantics<parallel>], iteration_bounds = array<i64: 1, 1>, scalar_prefetch = 0 : i64, scratch_operands = 0 : i64, tpu.core_type = #tpu.core_type<tc>, window_params = [{transform_indices = @transform_0, window_bounds = array<i64: 2, 4, 256>}, {pipeline_mode = #tpu.pipeline_mode<synchronous>, transform_indices = @transform_1, window_bounds = array<i64: 4, 1>}, {pipeline_mode = #tpu.pipeline_mode<synchronous>, transform_indices = @transform_2, window_bounds = array<i64: 4, 1>}, {transform_indices = @transform_3, window_bounds = array<i64: 2, 4, 256>}]} {
    %c0 = arith.constant 0 : index
    %c0_0 = arith.constant 0 : index
    %c0_1 = arith.constant 0 : index
    %0 = vector.load %arg2[%c0, %c0_0, %c0_1] : memref<2x4x256xf32, #tpu.memory_space<vmem>>, vector<2x4x256xf32>
    %cst = arith.constant dense<0.000000e+00> : vector<2x256xf32>
    %1 = vector.multi_reduction <add>, %0, %cst [1] : vector<2x4x256xf32> to vector<2x256xf32>
    %2 = vector.shape_cast %1 : vector<2x256xf32> to vector<2x1x256xf32>
    %cst_2 = arith.constant 4.000000e+00 : f32
    %3 = vector.broadcast %cst_2 : f32 to vector<2x1x256xf32>
    %4 = arith.divf %2, %3 : vector<2x1x256xf32>
    %5 = vector.broadcast %4 : vector<2x1x256xf32> to vector<2x4x256xf32>
    %6 = arith.subf %0, %5 : vector<2x4x256xf32>
    %7 = arith.mulf %6, %6 : vector<2x4x256xf32>
    %cst_3 = arith.constant dense<0.000000e+00> : vector<2x256xf32>
    %8 = vector.multi_reduction <add>, %7, %cst_3 [1] : vector<2x4x256xf32> to vector<2x256xf32>
    %9 = vector.shape_cast %8 : vector<2x256xf32> to vector<2x1x256xf32>
    %cst_4 = arith.constant 4.000000e+00 : f32
    %10 = vector.broadcast %cst_4 : f32 to vector<2x1x256xf32>
    %11 = arith.divf %9, %10 : vector<2x1x256xf32>
    %cst_5 = arith.constant 9.99999997E-7 : f32
    %12 = vector.broadcast %cst_5 : f32 to vector<2x1x256xf32>
    %13 = arith.addf %11, %12 : vector<2x1x256xf32>
    %14 = math.rsqrt %13 : vector<2x1x256xf32>
    %15 = vector.broadcast %14 : vector<2x1x256xf32> to vector<2x4x256xf32>
    %16 = arith.mulf %6, %15 : vector<2x4x256xf32>
    %c0_6 = arith.constant 0 : index
    %c0_7 = arith.constant 0 : index
    %17 = vector.load %arg3[%c0_6, %c0_7] : memref<4x1xf32, #tpu.memory_space<vmem>>, vector<4x1xf32>
    %18 = vector.shape_cast %17 : vector<4x1xf32> to vector<1x4x1xf32>
    %19 = vector.broadcast %18 : vector<1x4x1xf32> to vector<2x4x256xf32>
    %20 = arith.mulf %16, %19 : vector<2x4x256xf32>
    %c0_8 = arith.constant 0 : index
    %c0_9 = arith.constant 0 : index
    %21 = vector.load %arg4[%c0_8, %c0_9] : memref<4x1xf32, #tpu.memory_space<vmem>>, vector<4x1xf32>
    %22 = vector.shape_cast %21 : vector<4x1xf32> to vector<1x4x1xf32>
    %23 = vector.broadcast %22 : vector<1x4x1xf32> to vector<2x4x256xf32>
    %24 = arith.addf %20, %23 : vector<2x4x256xf32>
    %c0_10 = arith.constant 0 : index
    %c0_11 = arith.constant 0 : index
    %c0_12 = arith.constant 0 : index
    %25 = vector.load %arg5[%c0_10, %c0_11, %c0_12] : memref<2x4x256xf32, #tpu.memory_space<vmem>>, vector<2x4x256xf32>
    tpu.vector_store %arg5[%c0_10, %c0_11, %c0_12], %24 {strides = array<i32>} : memref<2x4x256xf32, #tpu.memory_space<vmem>>, vector<2x4x256xf32>,
    return
  }
  func.func @transform_0(%arg0: i32, %arg1: i32) -> (i32, i32, i32) {
    %c0_i32 = arith.constant 0 : i32
    %c0_i32_0 = arith.constant 0 : i32
    return %arg0, %c0_i32, %arg1 : i32, i32, i32
  }
  func.func @transform_1(%arg0: i32, %arg1: i32) -> (i32, i32) {
    %c0_i32 = arith.constant 0 : i32
    %c0_i32_0 = arith.constant 0 : i32
    %c0_i32_1 = arith.constant 0 : i32
    return %c0_i32, %c0_i32_0 : i32, i32
  }
  func.func @transform_2(%arg0: i32, %arg1: i32) -> (i32, i32) {
    %c0_i32 = arith.constant 0 : i32
    %c0_i32_0 = arith.constant 0 : i32
    %c0_i32_1 = arith.constant 0 : i32
    return %c0_i32, %c0_i32_0 : i32, i32
  }
  func.func @transform_3(%arg0: i32, %arg1: i32) -> (i32, i32, i32) {
    %c0_i32 = arith.constant 0 : i32
    %c0_i32_0 = arith.constant 0 : i32
    return %arg0, %c0_i32, %arg1 : i32, i32, i32
  }
}

</mosaic_0001>

<llo_original>
// kernel: tpu_custom_call.1
$region0: #{tpu_custom_call.1}
  #allocation0 [shape = 'u32[]', space=smem, size = 0x4, offset = 0x4, fixed_abs, tag = 'smem constant byte address 0x4 - core index']
  #allocation1 [shape = 'u32[144,128]{1,0:T(1,128)}', space=vmem, size = 0x12000, scoped, tag = 'internal scratch']
  %s0 = inlined_call_operand.hbm [shape: f32[2,4,256], index: 0, kind: input, shape index: {}]
  %s1 = inlined_call_operand.vmem [shape: f32[4,1], index: 1, kind: input, shape index: {}]
  %s2 = inlined_call_operand.vmem [shape: f32[4,1], index: 2, kind: input, shape index: {}]
  %s3 = inlined_call_operand.hbm [shape: f32[2,4,256], index: 3, kind: output, shape index: {}]
  %s4 = sld [smem:[#allocation0]]
  $region26: #{tpu_custom_call.1} parent=0
    _
  %s6 = ssub.s32 1, %s4
  %s7 = scalar_select 0, %s6, %s4
  $region1: #{tpu_custom_call.1} parent=0
    #allocation2 [shape = 'u8[8192]{0}', space=vmem, size = 0x2000, scoped, tag = 'input window, operand 0, single buffered']
    #allocation3 [shape = 's32[1]{0}', space=sflag, size = 0x4, scoped, tag = 'scoped memory for tpu_custom_call.1']
    #allocation4 [shape = 's32[1]{0}', space=sflag, size = 0x4, scoped, tag = 'scoped memory for tpu_custom_call.1']
    #allocation5 [shape = 'u8[8192]{0}', space=vmem, size = 0x2000, scoped, tag = 'output window, operand 0, single buffered']
    %8 = vsyncpa [#allocation3], 0
    %9 = vsyncpa [#allocation4], 0
    // Predicated region
    $region2: #{tpu_custom_call.1} parent=1 // pred_check
      _
    $region3: #{tpu_custom_call.1} parent=1 // pred_check_branch
      %11 = sbr.rel (0) target = $region5
    $region4: #{tpu_custom_call.1} parent=1 // pred_region
      %s13 = ssub.s32 256, 256
      %14 = vsyncadd [#allocation3], %s13
      %s15 = sshll.u32 [#allocation2], 4
      %s16 = int_to_ptr.vmem [resolvable:$true] %s15
      %21 = dma.hbm_to_vmem [thread:$0]  %s0, 256, %s16, [#allocation3], 128, 128, 8
    $region5: #{tpu_custom_call.1} parent=1 // pred_fallthru
      _
    // Predicated region
    $region6: #{tpu_custom_call.1} parent=1 // pred_check
      _
    $region7: #{tpu_custom_call.1} parent=1 // pred_check_branch
      %23 = sbr.rel (0) target = $region9
    $region8: #{tpu_custom_call.1} parent=1 // pred_region
      _
    $region9: #{tpu_custom_call.1} parent=1 // pred_fallthru
      _
    // Predicated region
    $region10: #{tpu_custom_call.1} parent=1 // pred_check
      _
    $region11: #{tpu_custom_call.1} parent=1 // pred_check_branch
      %25 = sbr.rel (0) target = $region13
    $region12: #{tpu_custom_call.1} parent=1 // pred_region
      _
    $region13: #{tpu_custom_call.1} parent=1 // pred_fallthru
      _
    // Predicated region
    $region14: #{tpu_custom_call.1} parent=1 // pred_check
      _
    $region15: #{tpu_custom_call.1} parent=1 // pred_check_branch
      %27 = sbr.rel (0) target = $region17
    $region16: #{tpu_custom_call.1} parent=1 // pred_region
      %28 = dma.done [#allocation3], 256
    $region17: #{tpu_custom_call.1} parent=1 // pred_fallthru
      _
    %v29 = vld [vmem:[#allocation2] sm:$0xff]
    %v30 = vld [vmem:[#allocation2 + $0x8] sm:$0xff]
    %v33 = vcombine.high %v29, %v29
    %v34 = vcombine.high %v30, %v30
    %vm37 = vcmask 1043456
    %v38 = vsel %vm37, %v29, 0.0
    %v39 = vrot.slane %v38, 4
    %v40 = vadd.f32 %v38, %v39
    %v41 = vrot.slane %v40, 2
    %v42 = vadd.f32 %v40, %v41
    %v43 = vrot.slane %v42, 1
    %v44 = vadd.f32 %v42, %v43
    %v45 = vsel %vm37, %v33, 0.0
    %v46 = vrot.slane %v45, 4
    %v47 = vadd.f32 %v45, %v46
    %v48 = vrot.slane %v47, 2
    %v49 = vadd.f32 %v47, %v48
    %v50 = vrot.slane %v49, 1
    %v51 = vadd.f32 %v49, %v50
    %v52 = vsel %vm37, %v30, 0.0
    %v53 = vrot.slane %v52, 4
    %v54 = vadd.f32 %v52, %v53
    %v55 = vrot.slane %v54, 2
    %v56 = vadd.f32 %v54, %v55
    %v57 = vrot.slane %v56, 1
    %v58 = vadd.f32 %v56, %v57
    %v59 = vsel %vm37, %v34, 0.0
    %v60 = vrot.slane %v59, 4
    %v61 = vadd.f32 %v59, %v60
    %v62 = vrot.slane %v61, 2
    %v63 = vadd.f32 %v61, %v62
    %v64 = vrot.slane %v63, 1
    %v65 = vadd.f32 %v63, %v64
    %v66 = vrcp.pop 4.0
    %v67 = vmul.f32 %v44, %v66
    %v68 = vmul.f32 %v51, %v66
    %v69 = vmul.f32 %v58, %v66
    %v70 = vmul.f32 %v65, %v66
    %v75 = vcombine.low %v67, %v68
    %v76 = vcombine.low %v69, %v70
    %v79 = vsub.f32 %v29, %v75
    %v80 = vsub.f32 %v30, %v76
    %v81 = vmul.f32 %v79, %v79
    %v82 = vmul.f32 %v80, %v80
    %v85 = vcombine.high %v81, %v81
    %v86 = vcombine.high %v82, %v82
    %v89 = vsel %vm37, %v81, 0.0
    %v90 = vrot.slane %v89, 4
    %v91 = vadd.f32 %v89, %v90
    %v92 = vrot.slane %v91, 2
    %v93 = vadd.f32 %v91, %v92
    %v94 = vrot.slane %v93, 1
    %v95 = vadd.f32 %v93, %v94
    %v96 = vsel %vm37, %v85, 0.0
    %v97 = vrot.slane %v96, 4
    %v98 = vadd.f32 %v96, %v97
    %v99 = vrot.slane %v98, 2
    %v100 = vadd.f32 %v98, %v99
    %v101 = vrot.slane %v100, 1
    %v102 = vadd.f32 %v100, %v101
    %v103 = vsel %vm37, %v82, 0.0
    %v104 = vrot.slane %v103, 4
    %v105 = vadd.f32 %v103, %v104
    %v106 = vrot.slane %v105, 2
    %v107 = vadd.f32 %v105, %v106
    %v108 = vrot.slane %v107, 1
    %v109 = vadd.f32 %v107, %v108
    %v110 = vsel %vm37, %v86, 0.0
    %v111 = vrot.slane %v110, 4
    %v112 = vadd.f32 %v110, %v111
    %v113 = vrot.slane %v112, 2
    %v114 = vadd.f32 %v112, %v113
    %v115 = vrot.slane %v114, 1
    %v116 = vadd.f32 %v114, %v115
    %v117 = vmul.f32 %v95, %v66
    %v118 = vmul.f32 %v102, %v66
    %v119 = vmul.f32 %v109, %v66
    %v120 = vmul.f32 %v116, %v66
    %v121 = vadd.f32 %v117, 1e-06
    %v122 = vadd.f32 %v118, 1e-06
    %v123 = vadd.f32 %v119, 1e-06
    %v124 = vadd.f32 %v120, 1e-06
    %v125 = vrsqrt.pop %v121
    %v126 = vrsqrt.pop %v122
    %v127 = vrsqrt.pop %v123
    %v128 = vrsqrt.pop %v124
    %v133 = vcombine.low %v125, %v126
    %v134 = vcombine.low %v127, %v128
    %v137 = vmul.f32 %v79, %v133
    %v138 = vmul.f32 %v80, %v134
    %v139 = vld [vmem:[%s1] sm:$0xf]
    %141 = vset.pattern.permute.xlu0 0
    %142 = vperm.xlu0 %141, %v139
    %v143 = vpop.permute.xlu0 %142
    %v145 = vunpack.c.l.s4 839922192
    %v146 = vunpack.c.0.s8 %v145
    %v147 = vlaneseq
    %v148 = vshrl.u32 %v147, 7
    %v149 = vsub.s32 %v146, %v148
    %v150 = vrot.slane %v143, %v149
    %v152 = vmul.f32 %v137, %v150
    %v153 = vmul.f32 %v138, %v150
    %v154 = vld [vmem:[%s2] sm:$0xf]
    %156 = vset.pattern.permute.xlu0 0
    %157 = vperm.xlu0 %156, %v154
    %v158 = vpop.permute.xlu0 %157
    %v160 = vunpack.c.l.s4 839922192
    %v161 = vunpack.c.0.s8 %v160
    %v162 = vlaneseq
    %v163 = vshrl.u32 %v162, 7
    %v164 = vsub.s32 %v161, %v163
    %v165 = vrot.slane %v158, %v164
    %v167 = vadd.f32 %v152, %v165
    %v168 = vadd.f32 %v153, %v165
    %169 = vst [vmem:[#allocation5] sm:$0xff] %v167
    %170 = vst [vmem:[#allocation5 + $0x8] sm:$0xff] %v168
    // Predicated region
    $region18: #{tpu_custom_call.1} parent=1 // pred_check
      _
    $region19: #{tpu_custom_call.1} parent=1 // pred_check_branch
      %172 = sbr.rel (0) target = $region21
    $region20: #{tpu_custom_call.1} parent=1 // pred_region
      %s174 = ssub.s32 256, 256
      %175 = vsyncadd [#allocation4], %s174
      %s176 = sshll.u32 [#allocation5], 4
      %s177 = int_to_ptr.vmem [resolvable:$true] %s176
      %182 = dma.vmem_to_hbm [thread:$0]  %s177, 256, %s3, [#allocation4], 128, 128, 8
    $region21: #{tpu_custom_call.1} parent=1 // pred_fallthru
      _
    // Predicated region
    $region22: #{tpu_custom_call.1} parent=1 // pred_check
      _
    $region23: #{tpu_custom_call.1} parent=1 // pred_check_branch
      %184 = sbr.rel (0) target = $region25
    $region24: #{tpu_custom_call.1} parent=1 // pred_region
      %185 = dma.done [#allocation4], 256
    $region25: #{tpu_custom_call.1} parent=1 // pred_fallthru
      _
    %186 = vsyncpa [#allocation3], 1
    %187 = vsyncpa [#allocation4], 1

</llo_original>
